<compile_context>
chip_gen: v6e
topology: v6e:2x2x1
jax: 0.10.0
libtpu: 0.0.40
codegen_flags: <defaults>
</compile_context>

<pallas_src>
import functools

import jax
import jax.numpy as jnp
from jax import lax
from jax.experimental import pallas as pl
from jax.experimental.pallas import tpu as pltpu


def _round_up(x: int, m: int) -> int:
    return ((x + m - 1) // m) * m


def lora_linear_kernel(x_ref, wfc_ref, bias_ref, wd_ref, wu_ref, scale_ref,
                       o_ref, acc_ref, down_ref):
    # Block shapes:
    #   x_ref:    (tm, tk)      activations
    #   wfc_ref:  (tn, tk)      base weight, (out, in) layout
    #   bias_ref: (1,  tn)
    #   wd_ref:   (r_pad, tk)   LoRA down, (rank, in) layout, rank zero-padded
    #   wu_ref:   (tn, r_pad)   LoRA up,   (out, rank) layout
    #   scale_ref:(1,) SMEM     lora_scale
    #   o_ref:    (tm, tn)
    #   acc_ref:  (tm, tn)  f32 VMEM scratch (base accumulator)
    #   down_ref: (tm, r_pad) f32 VMEM scratch (LoRA down accumulator)
    j = pl.program_id(1)
    k = pl.program_id(2)
    nk = pl.num_programs(2)

    @pl.when(k == 0)
    def _init_acc():
        acc_ref[...] = jnp.zeros_like(acc_ref)

    @pl.when(jnp.logical_and(j == 0, k == 0))
    def _init_down():
        down_ref[...] = jnp.zeros_like(down_ref)

    x = x_ref[...]

    # Base path: x_tile @ W_fc_tile^T (contract the `in` axis), native-dtype
    # operands, f32 accumulation on the MXU.
    acc_ref[...] += lax.dot_general(
        x, wfc_ref[...],
        dimension_numbers=(((1,), (1,)), ((), ())),
        preferred_element_type=jnp.float32)

    # LoRA down path: compute once per M tile (first N tile), reuse for all
    # other N tiles via the persistent VMEM scratch.
    @pl.when(j == 0)
    def _down():
        down_ref[...] += lax.dot_general(
            x, wd_ref[...],
            dimension_numbers=(((1,), (1,)), ((), ())),
            preferred_element_type=jnp.float32)

    # Finalize once per (i, j): up projection, bias, scale, cast, store.
    @pl.when(k == nk - 1)
    def _finalize():
        up = lax.dot_general(
            down_ref[...].astype(wu_ref.dtype), wu_ref[...],
            dimension_numbers=(((1,), (1,)), ((), ())),
            preferred_element_type=jnp.float32)
        scale = scale_ref[0]
        out = acc_ref[...] + bias_ref[...].astype(jnp.float32) + scale * up
        o_ref[...] = out.astype(o_ref.dtype)


@functools.partial(jax.jit, static_argnames=("tm", "tn", "tk"))
def monkey_patch_lora_linear(x, w_fc, b_fc, w_down, w_up, lora_scale,
                             *, tm=256, tn=256, tk=512):
    """x: (..., in); w_fc: (out, in); b_fc: (out,); w_down: (rank, in);
    w_up: (out, rank). Returns (..., out). Weights stay in PyTorch layout."""
    orig_dtype = x.dtype
    *lead, K = x.shape
    N = w_fc.shape[0]
    R = w_down.shape[0]
    M = 1
    for d in lead:
        M *= d

    # Clamp tiles to the (padded) problem size while keeping (8,128) legality.
    tm = min(tm, _round_up(M, 8))
    tn = min(tn, _round_up(N, 128))
    tk = min(tk, _round_up(K, 128))
    r_pad = _round_up(max(R, 128), 128)   # lane-dense LoRA rank

    Mp = _round_up(M, tm)
    Np = _round_up(N, tn)
    Kp = _round_up(K, tk)

    x2 = x.reshape(M, K)
    if (Mp, Kp) != (M, K):
        x2 = jnp.pad(x2, ((0, Mp - M), (0, Kp - K)))
    # No transposes: weights kept in (out, in) / (rank, in) / (out, rank).
    # Zero-padding happens once per call here; in production pad at load time.
    wfc_p = w_fc if (Np, Kp) == (N, K) else jnp.pad(
        w_fc, ((0, Np - N), (0, Kp - K)))
    wd_p = w_down if (r_pad, Kp) == (R, K) else jnp.pad(
        w_down, ((0, r_pad - R), (0, Kp - K)))
    wu_p = w_up if (Np, r_pad) == (N, R) else jnp.pad(
        w_up, ((0, Np - N), (0, r_pad - R)))
    bias_p = (b_fc if Np == N else jnp.pad(b_fc, (0, Np - N))).reshape(1, Np)
    scale = jnp.asarray(lora_scale, dtype=jnp.float32).reshape(1)

    grid = (Mp // tm, Np // tn, Kp // tk)

    itemsize = jnp.dtype(orig_dtype).itemsize
    flops = 2 * Mp * Kp * Np + 2 * Mp * Kp * r_pad + 2 * Mp * r_pad * Np
    bytes_accessed = (
        x2.size * x2.dtype.itemsize
        + wfc_p.size * wfc_p.dtype.itemsize
        + wd_p.size * wd_p.dtype.itemsize
        + wu_p.size * wu_p.dtype.itemsize
        + bias_p.size * bias_p.dtype.itemsize
        + Mp * Np * itemsize)

    out = pl.pallas_call(
        lora_linear_kernel,
        out_shape=jax.ShapeDtypeStruct((Mp, Np), orig_dtype),
        grid=grid,
        in_specs=[
            pl.BlockSpec((tm, tk), lambda i, j, k: (i, k)),      # x
            pl.BlockSpec((tn, tk), lambda i, j, k: (j, k)),      # W_fc (out,in)
            pl.BlockSpec((1, tn), lambda i, j, k: (0, j)),       # bias
            pl.BlockSpec((r_pad, tk), lambda i, j, k: (0, k)),   # W_down
            pl.BlockSpec((tn, r_pad), lambda i, j, k: (j, 0)),   # W_up
            pl.BlockSpec(memory_space=pltpu.SMEM),               # lora_scale
        ],
        out_specs=pl.BlockSpec((tm, tn), lambda i, j, k: (i, j)),
        scratch_shapes=[
            pltpu.VMEM((tm, tn), jnp.float32),     # base accumulator
            pltpu.VMEM((tm, r_pad), jnp.float32),  # LoRA down accumulator
        ],
        compiler_params=pltpu.CompilerParams(
            # j must be "arbitrary": down scratch computed at j==0 is reused by
            # later N tiles. i is parallel (megacore sharding on v7x).
            dimension_semantics=("parallel", "arbitrary", "arbitrary"),
            vmem_limit_bytes=32 * 1024 * 1024,
        ),
        cost_estimate=pl.CostEstimate(
            flops=flops, transcendentals=0, bytes_accessed=bytes_accessed),
    )(x2, wfc_p, bias_p, wd_p, wu_p, scale)

    return out[:M, :N].reshape(*lead, N)


if __name__ == "__main__":
    # --- Check 1: faithful module init (LoRA up = zeros), small shapes ------
    key = jax.random.PRNGKey(0)
    batch, seq, in_features, out_features, rank = 2, 8, 32, 32, 4
    lora_scale = 1.0
    k_x, k_w, k_b, k_d, k_u = jax.random.split(key, 5)

    x = jax.random.normal(k_x, (batch, seq, in_features), dtype=jnp.float32)
    bound = 1.0 / (in_features ** 0.5)
    w_fc = jax.random.uniform(k_w, (out_features, in_features),
                              minval=-bound, maxval=bound, dtype=jnp.float32)
    b_fc = jax.random.uniform(k_b, (out_features,),
                              minval=-bound, maxval=bound, dtype=jnp.float32)
    w_down = (1.0 / rank) * jax.random.normal(
        k_d, (rank, in_features), dtype=jnp.float32)
    w_up = jnp.zeros((out_features, rank), dtype=jnp.float32)

    y = monkey_patch_lora_linear(x, w_fc, b_fc, w_down, w_up, lora_scale)
    y = jax.block_until_ready(y)
    ref = x @ w_fc.T + b_fc + lora_scale * ((x @ w_down.T) @ w_up.T)
    assert y.shape == (batch, seq, out_features)
    assert jnp.allclose(y, ref, atol=1e-4, rtol=1e-4)

    # --- Check 2: non-zero LoRA weights, multi-tile grid (padding exercised) -
    batch, seq, in_features, out_features, rank = 2, 72, 384, 256, 4
    lora_scale = 0.5
    k_x, k_w, k_b, k_d, k_u = jax.random.split(jax.random.PRNGKey(1), 5)
    x = jax.random.normal(k_x, (batch, seq, in_features), dtype=jnp.float32)
    bound = 1.0 / (in_features ** 0.5)
    w_fc = jax.random.uniform(k_w, (out_features, in_features),
                              minval=-bound, maxval=bound, dtype=jnp.float32)
    b_fc = jax.random.uniform(k_b, (out_features,),
                              minval=-bound, maxval=bound, dtype=jnp.float32)
    w_down = (1.0 / rank) * jax.random.normal(
        k_d, (rank, in_features), dtype=jnp.float32)
    w_up = 0.02 * jax.random.normal(
        k_u, (out_features, rank), dtype=jnp.float32)

    y2 = monkey_patch_lora_linear(x, w_fc, b_fc, w_down, w_up, lora_scale,
                                  tm=64, tn=128, tk=128)
    y2 = jax.block_until_ready(y2)
    ref2 = x @ w_fc.T + b_fc + lora_scale * ((x @ w_down.T) @ w_up.T)
    assert y2.shape == (batch, seq, out_features)
    assert jnp.allclose(y2, ref2, atol=5e-4, rtol=5e-4)

    print("KERNEL_OK")
</pallas_src>

<mosaic_0001>
module attributes {stable_mosaic.version = 11 : i64} {
  func.func @lora_linear_kernel(%arg0: i32, %arg1: i32, %arg2: i32, %arg3: memref<16x128xf32, #tpu.memory_space<vmem>>, %arg4: memref<128x128xf32, #tpu.memory_space<vmem>>, %arg5: memref<1x128xf32, #tpu.memory_space<vmem>>, %arg6: memref<128x128xf32, #tpu.memory_space<vmem>>, %arg7: memref<128x128xf32, #tpu.memory_space<vmem>>, %arg8: memref<1xf32, #tpu.memory_space<smem>>, %arg9: memref<16x128xf32, #tpu.memory_space<vmem>>, %arg10: memref<16x128xf32, #tpu.memory_space<vmem>>, %arg11: memref<16x128xf32, #tpu.memory_space<vmem>>) attributes {dimension_semantics = [#tpu.dimension_semantics<parallel>, #tpu.dimension_semantics<arbitrary>, #tpu.dimension_semantics<arbitrary>], iteration_bounds = array<i64: 1, 1, 1>, scalar_prefetch = 0 : i64, scratch_operands = 2 : i64, tpu.core_type = #tpu.core_type<tc>, window_params = [{transform_indices = @transform_0, window_bounds = array<i64: 16, 128>}, {transform_indices = @transform_1, window_bounds = array<i64: 128, 128>}, {transform_indices = @transform_2, window_bounds = array<i64: 1, 128>}, {transform_indices = @transform_3, window_bounds = array<i64: 128, 128>}, {transform_indices = @transform_4, window_bounds = array<i64: 128, 128>}, {transform_indices = @transform_5, window_bounds = array<i64: 1>}, {transform_indices = @transform_6, window_bounds = array<i64: 16, 128>}]} {
    %c0_i32 = arith.constant 0 : i32
    %0 = arith.cmpi eq, %arg2, %c0_i32 : i32
    %1 = arith.extui %0 : i1 to i32
    %c0_i32_0 = arith.constant 0 : i32
    %2 = arith.cmpi ne, %1, %c0_i32_0 : i32
    scf.if %2 {
      %cst_15 = arith.constant 0.000000e+00 : f32
      %20 = vector.broadcast %cst_15 : f32 to vector<16x128xf32>
      %c0_16 = arith.constant 0 : index
      %c0_17 = arith.constant 0 : index
      %21 = vector.load %arg10[%c0_16, %c0_17] : memref<16x128xf32, #tpu.memory_space<vmem>>, vector<16x128xf32>
      tpu.vector_store %arg10[%c0_16, %c0_17], %20 {strides = array<i32>} : memref<16x128xf32, #tpu.memory_space<vmem>>, vector<16x128xf32>,
    } else {
    }
    %c0_i32_1 = arith.constant 0 : i32
    %3 = arith.cmpi eq, %arg1, %c0_i32_1 : i32
    %c0_i32_2 = arith.constant 0 : i32
    %4 = arith.cmpi eq, %arg2, %c0_i32_2 : i32
    %5 = arith.andi %3, %4 : i1
    %6 = arith.extui %5 : i1 to i32
    %c0_i32_3 = arith.constant 0 : i32
    %7 = arith.cmpi ne, %6, %c0_i32_3 : i32
    scf.if %7 {
      %cst_15 = arith.constant 0.000000e+00 : f32
      %20 = vector.broadcast %cst_15 : f32 to vector<16x128xf32>
      %c0_16 = arith.constant 0 : index
      %c0_17 = arith.constant 0 : index
      %21 = vector.load %arg11[%c0_16, %c0_17] : memref<16x128xf32, #tpu.memory_space<vmem>>, vector<16x128xf32>
      tpu.vector_store %arg11[%c0_16, %c0_17], %20 {strides = array<i32>} : memref<16x128xf32, #tpu.memory_space<vmem>>, vector<16x128xf32>,
    } else {
    }
    %c0 = arith.constant 0 : index
    %c0_4 = arith.constant 0 : index
    %8 = vector.load %arg3[%c0, %c0_4] : memref<16x128xf32, #tpu.memory_space<vmem>>, vector<16x128xf32>
    %c0_5 = arith.constant 0 : index
    %c0_6 = arith.constant 0 : index
    %9 = vector.load %arg10[%c0_5, %c0_6] : memref<16x128xf32, #tpu.memory_space<vmem>>, vector<16x128xf32>
    %c0_7 = arith.constant 0 : index
    %c0_8 = arith.constant 0 : index
    %10 = vector.load %arg4[%c0_7, %c0_8] : memref<128x128xf32, #tpu.memory_space<vmem>>, vector<128x128xf32>
    %cst = arith.constant dense<0.000000e+00> : vector<16x128xf32>
    %11 = tpu.matmul %8, %10, %cst {dimension_numbers = #tpu.dot_dimension_numbers<[1], [1], [0], [0], [0, 0, 1, 0], [], []>} : vector<16x128xf32>, vector<128x128xf32>, vector<16x128xf32> -> vector<16x128xf32>
    %12 = arith.addf %9, %11 : vector<16x128xf32>
    %c0_9 = arith.constant 0 : index
    %c0_10 = arith.constant 0 : index
    %13 = vector.load %arg10[%c0_9, %c0_10] : memref<16x128xf32, #tpu.memory_space<vmem>>, vector<16x128xf32>
    tpu.vector_store %arg10[%c0_9, %c0_10], %12 {strides = array<i32>} : memref<16x128xf32, #tpu.memory_space<vmem>>, vector<16x128xf32>,
    %c0_i32_11 = arith.constant 0 : i32
    %14 = arith.cmpi eq, %arg1, %c0_i32_11 : i32
    %15 = arith.extui %14 : i1 to i32
    %c0_i32_12 = arith.constant 0 : i32
    %16 = arith.cmpi ne, %15, %c0_i32_12 : i32
    scf.if %16 {
      %c0_15 = arith.constant 0 : index
      %c0_16 = arith.constant 0 : index
      %20 = vector.load %arg11[%c0_15, %c0_16] : memref<16x128xf32, #tpu.memory_space<vmem>>, vector<16x128xf32>
      %c0_17 = arith.constant 0 : index
      %c0_18 = arith.constant 0 : index
      %21 = vector.load %arg6[%c0_17, %c0_18] : memref<128x128xf32, #tpu.memory_space<vmem>>, vector<128x128xf32>
      %cst_19 = arith.constant dense<0.000000e+00> : vector<16x128xf32>
      %22 = tpu.matmul %8, %21, %cst_19 {dimension_numbers = #tpu.dot_dimension_numbers<[1], [1], [0], [0], [0, 0, 1, 0], [], []>} : vector<16x128xf32>, vector<128x128xf32>, vector<16x128xf32> -> vector<16x128xf32>
      %23 = arith.addf %20, %22 : vector<16x128xf32>
      %c0_20 = arith.constant 0 : index
      %c0_21 = arith.constant 0 : index
      %24 = vector.load %arg11[%c0_20, %c0_21] : memref<16x128xf32, #tpu.memory_space<vmem>>, vector<16x128xf32>
      tpu.vector_store %arg11[%c0_20, %c0_21], %23 {strides = array<i32>} : memref<16x128xf32, #tpu.memory_space<vmem>>, vector<16x128xf32>,
    } else {
    }
    %c0_i32_13 = arith.constant 0 : i32
    %17 = arith.cmpi eq, %arg2, %c0_i32_13 : i32
    %18 = arith.extui %17 : i1 to i32
    %c0_i32_14 = arith.constant 0 : i32
    %19 = arith.cmpi ne, %18, %c0_i32_14 : i32
    scf.if %19 {
      %c0_15 = arith.constant 0 : index
      %c0_16 = arith.constant 0 : index
      %20 = vector.load %arg11[%c0_15, %c0_16] : memref<16x128xf32, #tpu.memory_space<vmem>>, vector<16x128xf32>
      %c0_17 = arith.constant 0 : index
      %c0_18 = arith.constant 0 : index
      %21 = vector.load %arg7[%c0_17, %c0_18] : memref<128x128xf32, #tpu.memory_space<vmem>>, vector<128x128xf32>
      %cst_19 = arith.constant dense<0.000000e+00> : vector<16x128xf32>
      %22 = tpu.matmul %20, %21, %cst_19 {dimension_numbers = #tpu.dot_dimension_numbers<[1], [1], [0], [0], [0, 0, 1, 0], [], []>} : vector<16x128xf32>, vector<128x128xf32>, vector<16x128xf32> -> vector<16x128xf32>
      %c0_20 = arith.constant 0 : index
      %23 = memref.load %arg8[%c0_20] : memref<1xf32, #tpu.memory_space<smem>>
      %c0_21 = arith.constant 0 : index
      %c0_22 = arith.constant 0 : index
      %24 = vector.load %arg10[%c0_21, %c0_22] : memref<16x128xf32, #tpu.memory_space<vmem>>, vector<16x128xf32>
      %c0_23 = arith.constant 0 : index
      %c0_24 = arith.constant 0 : index
      %25 = vector.load %arg5[%c0_23, %c0_24] : memref<1x128xf32, #tpu.memory_space<vmem>>, vector<1x128xf32>
      %26 = vector.broadcast %25 : vector<1x128xf32> to vector<16x128xf32>
      %27 = arith.addf %24, %26 : vector<16x128xf32>
      %28 = vector.broadcast %23 : f32 to vector<16x128xf32>
      %29 = arith.mulf %28, %22 : vector<16x128xf32>
      %30 = arith.addf %27, %29 : vector<16x128xf32>
      %c0_25 = arith.constant 0 : index
      %c0_26 = arith.constant 0 : index
      %31 = vector.load %arg9[%c0_25, %c0_26] : memref<16x128xf32, #tpu.memory_space<vmem>>, vector<16x128xf32>
      tpu.vector_store %arg9[%c0_25, %c0_26], %30 {strides = array<i32>} : memref<16x128xf32, #tpu.memory_space<vmem>>, vector<16x128xf32>,
    } else {
    }
    return
  }
  func.func @transform_0(%arg0: i32, %arg1: i32, %arg2: i32) -> (i32, i32) {
    %c0_i32 = arith.constant 0 : i32
    return %arg0, %arg2 : i32, i32
  }
  func.func @transform_1(%arg0: i32, %arg1: i32, %arg2: i32) -> (i32, i32) {
    %c0_i32 = arith.constant 0 : i32
    return %arg1, %arg2 : i32, i32
  }
  func.func @transform_2(%arg0: i32, %arg1: i32, %arg2: i32) -> (i32, i32) {
    %c0_i32 = arith.constant 0 : i32
    %c0_i32_0 = arith.constant 0 : i32
    return %c0_i32, %arg1 : i32, i32
  }
  func.func @transform_3(%arg0: i32, %arg1: i32, %arg2: i32) -> (i32, i32) {
    %c0_i32 = arith.constant 0 : i32
    %c0_i32_0 = arith.constant 0 : i32
    return %c0_i32, %arg2 : i32, i32
  }
  func.func @transform_4(%arg0: i32, %arg1: i32, %arg2: i32) -> (i32, i32) {
    %c0_i32 = arith.constant 0 : i32
    %c0_i32_0 = arith.constant 0 : i32
    return %arg1, %c0_i32 : i32, i32
  }
  func.func @transform_5(%arg0: i32, %arg1: i32, %arg2: i32) -> i32 {
    %c0_i32 = arith.constant 0 : i32
    %c0_i32_0 = arith.constant 0 : i32
    return %c0_i32 : i32
  }
  func.func @transform_6(%arg0: i32, %arg1: i32, %arg2: i32) -> (i32, i32) {
    %c0_i32 = arith.constant 0 : i32
    return %arg0, %arg1 : i32, i32
  }
}

</mosaic_0001>

<llo_original>
// kernel: monkey_patch_lora_linear.1
$region0: #{monkey_patch_lora_linear.1}
  #allocation0 [shape = 'u32[]', space=smem, size = 0x4, offset = 0x4, fixed_abs, tag = 'smem constant byte address 0x4 - core index']
  #allocation1 [shape = 'u32[144,128]{1,0:T(1,128)}', space=vmem, size = 0x12000, scoped, tag = 'internal scratch']
  #allocation2 [shape = 'f32[16,128]{1,0:T(8,128)}', space=vmem, size = 0x2000, scoped, tag = 'scratch operand']
  #allocation3 [shape = 'f32[16,128]{1,0:T(8,128)}', space=vmem, size = 0x2000, scoped, tag = 'scratch operand']
  #allocation4 [shape = 'f32[1]{0:T(128)S(6)}', space=smem, size = 0x200, scoped, tag = 'scoped memory for monkey_patch_lora_linear.1']
  %s0 = inlined_call_operand.vmem [shape: f32[16,128], index: 0, kind: input, shape index: {}]
  %s1 = inlined_call_operand.vmem [shape: f32[128,128], index: 1, kind: input, shape index: {}]
  %s2 = inlined_call_operand.vmem [shape: f32[1,128], index: 2, kind: input, shape index: {}]
  %s3 = inlined_call_operand.vmem [shape: f32[128,128], index: 3, kind: input, shape index: {}]
  %s4 = inlined_call_operand.vmem [shape: f32[128,128], index: 4, kind: input, shape index: {}]
  %s5 = inlined_call_operand.<no memory space> [shape: f32[1], index: 5, kind: input, shape index: {}]
  %s6 = inlined_call_operand.vmem [shape: f32[16,128], index: 6, kind: output, shape index: {}]
  %s7 = sld [smem:[#allocation0]]
  $region50: #{monkey_patch_lora_linear.1} parent=0
    _
  %s9 = ssub.s32 1, %s7
  %s10 = scalar_select 0, %s9, %s7
  %11 = sst [smem:[#allocation4]] %s5
  // Predicated region
  $region2: #{monkey_patch_lora_linear.1} parent=0 // pred_check
    _
  $region3: #{monkey_patch_lora_linear.1} parent=0 // pred_check_branch
    %13 = sbr.rel (0) target = $region5
  $region4: #{monkey_patch_lora_linear.1} parent=0 // pred_region
    _
  $region5: #{monkey_patch_lora_linear.1} parent=0 // pred_fallthru
    _
  // Predicated region
  $region6: #{monkey_patch_lora_linear.1} parent=0 // pred_check
    _
  $region7: #{monkey_patch_lora_linear.1} parent=0 // pred_check_branch
    %15 = sbr.rel (0) target = $region9
  $region8: #{monkey_patch_lora_linear.1} parent=0 // pred_region
    _
  $region9: #{monkey_patch_lora_linear.1} parent=0 // pred_fallthru
    _
  // Predicated region
  $region10: #{monkey_patch_lora_linear.1} parent=0 // pred_check
    _
  $region11: #{monkey_patch_lora_linear.1} parent=0 // pred_check_branch
    %17 = sbr.rel (0) target = $region13
  $region12: #{monkey_patch_lora_linear.1} parent=0 // pred_region
    _
  $region13: #{monkey_patch_lora_linear.1} parent=0 // pred_fallthru
    _
  // Predicated region
  $region14: #{monkey_patch_lora_linear.1} parent=0 // pred_check
    _
  $region15: #{monkey_patch_lora_linear.1} parent=0 // pred_check_branch
    %19 = sbr.rel (0) target = $region17
  $region16: #{monkey_patch_lora_linear.1} parent=0 // pred_region
    _
  $region17: #{monkey_patch_lora_linear.1} parent=0 // pred_fallthru
    _
  // Predicated region
  $region18: #{monkey_patch_lora_linear.1} parent=0 // pred_check
    _
  $region19: #{monkey_patch_lora_linear.1} parent=0 // pred_check_branch
    %21 = sbr.rel (0) target = $region21
  $region20: #{monkey_patch_lora_linear.1} parent=0 // pred_region
    _
  $region21: #{monkey_patch_lora_linear.1} parent=0 // pred_fallthru
    _
  // Predicated region
  $region22: #{monkey_patch_lora_linear.1} parent=0 // pred_check
    _
  $region23: #{monkey_patch_lora_linear.1} parent=0 // pred_check_branch
    %23 = sbr.rel (0) target = $region25
  $region24: #{monkey_patch_lora_linear.1} parent=0 // pred_region
    _
  $region25: #{monkey_patch_lora_linear.1} parent=0 // pred_fallthru
    _
  %p24 = scmp.eq.s32.totalorder 0, 0
  // Predicated region
  $region26: #{monkey_patch_lora_linear.1} parent=0 // pred_check
    %p25 = pneg %p24
  $region27: #{monkey_patch_lora_linear.1} parent=0 // pred_check_branch
    %27 = sbr.rel (%p25) target = $region29
  $region28: #{monkey_patch_lora_linear.1} parent=0 // pred_region
    %28 = vst [vmem:[#allocation2] sm:$0xff] 0.0
    %29 = vst [vmem:[#allocation2 + $0x8] sm:$0xff] 0.0
  $region29: #{monkey_patch_lora_linear.1} parent=0 // pred_fallthru
    _
  %p30 = scmp.eq.s32.totalorder 0, 0
  %p31 = pnand %p30, %p24
  %p32 = pneg %p31
  // Predicated region
  $region30: #{monkey_patch_lora_linear.1} parent=0 // pred_check
    _
  $region31: #{monkey_patch_lora_linear.1} parent=0 // pred_check_branch
    %34 = sbr.rel (%p31) target = $region33
  $region32: #{monkey_patch_lora_linear.1} parent=0 // pred_region
    %35 = vst [vmem:[#allocation3] sm:$0xff] 0.0
    %36 = vst [vmem:[#allocation3 + $0x8] sm:$0xff] 0.0
  $region33: #{monkey_patch_lora_linear.1} parent=0 // pred_fallthru
    _
  %v37 = vld [vmem:[%s0] sm:$0xff]
  %v38 = vld [vmem:[%s0 + $0x8] sm:$0xff]
  %v39 = vld [vmem:[#allocation2] sm:$0xff]
  %v40 = vld [vmem:[#allocation2 + $0x8] sm:$0xff]
  %v41 = vld [vmem:[%s1] sm:$0xff]
  %v42 = vld [vmem:[%s1 + $0x8] sm:$0xff]
  %v43 = vld [vmem:[%s1 + $0x10] sm:$0xff]
  %v44 = vld [vmem:[%s1 + $0x18] sm:$0xff]
  %v45 = vld [vmem:[%s1 + $0x20] sm:$0xff]
  %v46 = vld [vmem:[%s1 + $0x28] sm:$0xff]
  %v47 = vld [vmem:[%s1 + $0x30] sm:$0xff]
  %v48 = vld [vmem:[%s1 + $0x38] sm:$0xff]
  %v49 = vld [vmem:[%s1 + $0x40] sm:$0xff]
  %v50 = vld [vmem:[%s1 + $0x48] sm:$0xff]
  %v51 = vld [vmem:[%s1 + $0x50] sm:$0xff]
  %v52 = vld [vmem:[%s1 + $0x58] sm:$0xff]
  %v53 = vld [vmem:[%s1 + $0x60] sm:$0xff]
  %v54 = vld [vmem:[%s1 + $0x68] sm:$0xff]
  %v55 = vld [vmem:[%s1 + $0x70] sm:$0xff]
  %v56 = vld [vmem:[%s1 + $0x78] sm:$0xff]
  %57 = vmatprep.subr.mxu0 0.0
  %58 = vmatpush1.xpose.msra.mxu0 %v56
  %59 = vmatprep.subr.mxu0 0.0
  %60 = vmatpush1.xpose.msra.mxu0 %v55
  %61 = vmatprep.subr.mxu0 0.0
  %62 = vmatpush1.xpose.msra.mxu0 %v54
  %63 = vmatprep.subr.mxu0 0.0
  %64 = vmatpush1.xpose.msra.mxu0 %v53
  %65 = vmatprep.subr.mxu0 0.0
  %66 = vmatpush1.xpose.msra.mxu0 %v52
  %67 = vmatprep.subr.mxu0 0.0
  %68 = vmatpush1.xpose.msra.mxu0 %v51
  %69 = vmatprep.subr.mxu0 0.0
  %70 = vmatpush1.xpose.msra.mxu0 %v50
  %71 = vmatprep.subr.mxu0 0.0
  %72 = vmatpush1.xpose.msra.mxu0 %v49
  %73 = vmatprep.subr.mxu0 0.0
  %74 = vmatpush1.xpose.msra.mxu0 %v48
  %75 = vmatprep.subr.mxu0 0.0
  %76 = vmatpush1.xpose.msra.mxu0 %v47
  %77 = vmatprep.subr.mxu0 0.0
  %78 = vmatpush1.xpose.msra.mxu0 %v46
  %79 = vmatprep.subr.mxu0 0.0
  %80 = vmatpush1.xpose.msra.mxu0 %v45
  %81 = vmatprep.subr.mxu0 0.0
  %82 = vmatpush1.xpose.msra.mxu0 %v44
  %83 = vmatprep.subr.mxu0 0.0
  %84 = vmatpush1.xpose.msra.mxu0 %v43
  %85 = vmatprep.subr.mxu0 0.0
  %86 = vmatpush1.xpose.msra.mxu0 %v42
  %87 = vmatprep.subr.mxu0 0.0
  %88 = vmatpush1.xpose.msra.mxu0 %v41
  %89 = vmatprep.subr.mxu0 0.0
  %90 = vmatpush2.xpose.msra.mxu0 0.0
  %91 = vmatprep.subr.mxu0 0.0
  %92 = vmatpush2.xpose.msra.mxu0 0.0
  %93 = vmatprep.subr.mxu0 0.0
  %94 = vmatpush2.xpose.msra.mxu0 0.0
  %95 = vmatprep.subr.mxu0 0.0
  %96 = vmatpush2.xpose.msra.mxu0 0.0
  %97 = vmatprep.subr.mxu0 0.0
  %98 = vmatpush2.xpose.msra.mxu0 0.0
  %99 = vmatprep.subr.mxu0 0.0
  %100 = vmatpush2.xpose.msra.mxu0 0.0
  %101 = vmatprep.subr.mxu0 0.0
  %102 = vmatpush2.xpose.msra.mxu0 0.0
  %103 = vmatprep.subr.mxu0 0.0
  %104 = vmatpush2.xpose.msra.mxu0 0.0
  %105 = vmatprep.subr.mxu0 0.0
  %106 = vmatpush2.xpose.msra.mxu0 0.0
  %107 = vmatprep.subr.mxu0 0.0
  %108 = vmatpush2.xpose.msra.mxu0 0.0
  %109 = vmatprep.subr.mxu0 0.0
  %110 = vmatpush2.xpose.msra.mxu0 0.0
  %111 = vmatprep.subr.mxu0 0.0
  %112 = vmatpush2.xpose.msra.mxu0 0.0
  %113 = vmatprep.subr.mxu0 0.0
  %114 = vmatpush2.xpose.msra.mxu0 0.0
  %115 = vmatprep.subr.mxu0 0.0
  %116 = vmatpush2.xpose.msra.mxu0 0.0
  %117 = vmatprep.subr.mxu0 0.0
  %118 = vmatpush2.xpose.msra.mxu0 0.0
  %119 = vmatprep.subr.mxu0 0.0
  %120 = vmatpush2.xpose.msra.mxu0 0.0
  %121 = vmatprep.mubr.f32.mxu0 0.0
  %122 = vmatmul.mubr.f32.gmra.mxu0 %v37
  %v123 = vpop.f32.mrf.mxu0
  %v124 = vadd.f32 0.0, %v123
  %v125 = vpop.f32.mrf.mxu0
  %126 = vmatprep.mubr.f32.mxu0 0.0
  %127 = vmatmul.mubr.f32.gmra.mxu0 %v38
  %v128 = vpop.f32.mrf.mxu0
  %v129 = vadd.f32 0.0, %v128
  %v130 = vpop.f32.mrf.mxu0
  %131 = vdwg.mxu0
  %v132 = vadd.f32 %v39, %v124
  %v133 = vadd.f32 %v40, %v129
  %134 = vst [vmem:[#allocation2] sm:$0xff] %v132
  %135 = vst [vmem:[#allocation2 + $0x8] sm:$0xff] %v133
  // Predicated region
  $region34: #{monkey_patch_lora_linear.1} parent=0 // pred_check
    %p136 = pneg %p30
  $region35: #{monkey_patch_lora_linear.1} parent=0 // pred_check_branch
    %138 = sbr.rel (%p136) target = $region37
  $region36: #{monkey_patch_lora_linear.1} parent=0 // pred_region
    %v139 = vld [vmem:[#allocation3] sm:$0xff]
    %v140 = vld [vmem:[#allocation3 + $0x8] sm:$0xff]
    %v141 = vld [vmem:[%s3] sm:$0xff]
    %v142 = vld [vmem:[%s3 + $0x8] sm:$0xff]
    %v143 = vld [vmem:[%s3 + $0x10] sm:$0xff]
    %v144 = vld [vmem:[%s3 + $0x18] sm:$0xff]
    %v145 = vld [vmem:[%s3 + $0x20] sm:$0xff]
    %v146 = vld [vmem:[%s3 + $0x28] sm:$0xff]
    %v147 = vld [vmem:[%s3 + $0x30] sm:$0xff]
    %v148 = vld [vmem:[%s3 + $0x38] sm:$0xff]
    %v149 = vld [vmem:[%s3 + $0x40] sm:$0xff]
    %v150 = vld [vmem:[%s3 + $0x48] sm:$0xff]
    %v151 = vld [vmem:[%s3 + $0x50] sm:$0xff]
    %v152 = vld [vmem:[%s3 + $0x58] sm:$0xff]
    %v153 = vld [vmem:[%s3 + $0x60] sm:$0xff]
    %v154 = vld [vmem:[%s3 + $0x68] sm:$0xff]
    %v155 = vld [vmem:[%s3 + $0x70] sm:$0xff]
    %v156 = vld [vmem:[%s3 + $0x78] sm:$0xff]
    %157 = vmatprep.subr.mxu0 0.0
    %158 = vmatpush1.xpose.msra.mxu0 %v156
    %159 = vmatprep.subr.mxu0 0.0
    %160 = vmatpush1.xpose.msra.mxu0 %v155
    %161 = vmatprep.subr.mxu0 0.0
    %162 = vmatpush1.xpose.msra.mxu0 %v154
    %163 = vmatprep.subr.mxu0 0.0
    %164 = vmatpush1.xpose.msra.mxu0 %v153
    %165 = vmatprep.subr.mxu0 0.0
    %166 = vmatpush1.xpose.msra.mxu0 %v152
    %167 = vmatprep.subr.mxu0 0.0
    %168 = vmatpush1.xpose.msra.mxu0 %v151
    %169 = vmatprep.subr.mxu0 0.0
    %170 = vmatpush1.xpose.msra.mxu0 %v150
    %171 = vmatprep.subr.mxu0 0.0
    %172 = vmatpush1.xpose.msra.mxu0 %v149
    %173 = vmatprep.subr.mxu0 0.0
    %174 = vmatpush1.xpose.msra.mxu0 %v148
    %175 = vmatprep.subr.mxu0 0.0
    %176 = vmatpush1.xpose.msra.mxu0 %v147
    %177 = vmatprep.subr.mxu0 0.0
    %178 = vmatpush1.xpose.msra.mxu0 %v146
    %179 = vmatprep.subr.mxu0 0.0
    %180 = vmatpush1.xpose.msra.mxu0 %v145
    %181 = vmatprep.subr.mxu0 0.0
    %182 = vmatpush1.xpose.msra.mxu0 %v144
    %183 = vmatprep.subr.mxu0 0.0
    %184 = vmatpush1.xpose.msra.mxu0 %v143
    %185 = vmatprep.subr.mxu0 0.0
    %186 = vmatpush1.xpose.msra.mxu0 %v142
    %187 = vmatprep.subr.mxu0 0.0
    %188 = vmatpush1.xpose.msra.mxu0 %v141
    %189 = vmatprep.subr.mxu0 0.0
    %190 = vmatpush2.xpose.msra.mxu0 0.0
    %191 = vmatprep.subr.mxu0 0.0
    %192 = vmatpush2.xpose.msra.mxu0 0.0
    %193 = vmatprep.subr.mxu0 0.0
    %194 = vmatpush2.xpose.msra.mxu0 0.0
    %195 = vmatprep.subr.mxu0 0.0
    %196 = vmatpush2.xpose.msra.mxu0 0.0
    %197 = vmatprep.subr.mxu0 0.0
    %198 = vmatpush2.xpose.msra.mxu0 0.0
    %199 = vmatprep.subr.mxu0 0.0
    %200 = vmatpush2.xpose.msra.mxu0 0.0
    %201 = vmatprep.subr.mxu0 0.0
    %202 = vmatpush2.xpose.msra.mxu0 0.0
    %203 = vmatprep.subr.mxu0 0.0
    %204 = vmatpush2.xpose.msra.mxu0 0.0
    %205 = vmatprep.subr.mxu0 0.0
    %206 = vmatpush2.xpose.msra.mxu0 0.0
    %207 = vmatprep.subr.mxu0 0.0
    %208 = vmatpush2.xpose.msra.mxu0 0.0
    %209 = vmatprep.subr.mxu0 0.0
    %210 = vmatpush2.xpose.msra.mxu0 0.0
    %211 = vmatprep.subr.mxu0 0.0
    %212 = vmatpush2.xpose.msra.mxu0 0.0
    %213 = vmatprep.subr.mxu0 0.0
    %214 = vmatpush2.xpose.msra.mxu0 0.0
    %215 = vmatprep.subr.mxu0 0.0
    %216 = vmatpush2.xpose.msra.mxu0 0.0
    %217 = vmatprep.subr.mxu0 0.0
    %218 = vmatpush2.xpose.msra.mxu0 0.0
    %219 = vmatprep.subr.mxu0 0.0
    %220 = vmatpush2.xpose.msra.mxu0 0.0
    %221 = vmatprep.mubr.f32.mxu0 0.0
    %222 = vmatmul.mubr.f32.gmra.mxu0 %v37
    %v223 = vpop.f32.mrf.mxu0
    %v224 = vadd.f32 0.0, %v223
    %v225 = vpop.f32.mrf.mxu0
    %226 = vmatprep.mubr.f32.mxu0 0.0
    %227 = vmatmul.mubr.f32.gmra.mxu0 %v38
    %v228 = vpop.f32.mrf.mxu0
    %v229 = vadd.f32 0.0, %v228
    %v230 = vpop.f32.mrf.mxu0
    %231 = vdwg.mxu0
    %v232 = vadd.f32 %v139, %v224
    %v233 = vadd.f32 %v140, %v229
    %234 = vst [vmem:[#allocation3] sm:$0xff] %v232
    %235 = vst [vmem:[#allocation3 + $0x8] sm:$0xff] %v233
  $region37: #{monkey_patch_lora_linear.1} parent=0 // pred_fallthru
    _
  // Predicated region
  $region38: #{monkey_patch_lora_linear.1} parent=0 // pred_check
    %p236 = pneg %p24
  $region39: #{monkey_patch_lora_linear.1} parent=0 // pred_check_branch
    %238 = sbr.rel (%p236) target = $region41
  $region40: #{monkey_patch_lora_linear.1} parent=0 // pred_region
    %v239 = vld [vmem:[#allocation3] sm:$0xff]
    %v240 = vld [vmem:[#allocation3 + $0x8] sm:$0xff]
    %v241 = vld [vmem:[%s4] sm:$0xff]
    %v242 = vld [vmem:[%s4 + $0x8] sm:$0xff]
    %v243 = vld [vmem:[%s4 + $0x10] sm:$0xff]
    %v244 = vld [vmem:[%s4 + $0x18] sm:$0xff]
    %v245 = vld [vmem:[%s4 + $0x20] sm:$0xff]
    %v246 = vld [vmem:[%s4 + $0x28] sm:$0xff]
    %v247 = vld [vmem:[%s4 + $0x30] sm:$0xff]
    %v248 = vld [vmem:[%s4 + $0x38] sm:$0xff]
    %v249 = vld [vmem:[%s4 + $0x40] sm:$0xff]
    %v250 = vld [vmem:[%s4 + $0x48] sm:$0xff]
    %v251 = vld [vmem:[%s4 + $0x50] sm:$0xff]
    %v252 = vld [vmem:[%s4 + $0x58] sm:$0xff]
    %v253 = vld [vmem:[%s4 + $0x60] sm:$0xff]
    %v254 = vld [vmem:[%s4 + $0x68] sm:$0xff]
    %v255 = vld [vmem:[%s4 + $0x70] sm:$0xff]
    %v256 = vld [vmem:[%s4 + $0x78] sm:$0xff]
    %257 = vmatprep.subr.mxu0 0.0
    %258 = vmatpush1.xpose.msra.mxu0 %v256
    %259 = vmatprep.subr.mxu0 0.0
    %260 = vmatpush1.xpose.msra.mxu0 %v255
    %261 = vmatprep.subr.mxu0 0.0
    %262 = vmatpush1.xpose.msra.mxu0 %v254
    %263 = vmatprep.subr.mxu0 0.0
    %264 = vmatpush1.xpose.msra.mxu0 %v253
    %265 = vmatprep.subr.mxu0 0.0
    %266 = vmatpush1.xpose.msra.mxu0 %v252
    %267 = vmatprep.subr.mxu0 0.0
    %268 = vmatpush1.xpose.msra.mxu0 %v251
    %269 = vmatprep.subr.mxu0 0.0
    %270 = vmatpush1.xpose.msra.mxu0 %v250
    %271 = vmatprep.subr.mxu0 0.0
    %272 = vmatpush1.xpose.msra.mxu0 %v249
    %273 = vmatprep.subr.mxu0 0.0
    %274 = vmatpush1.xpose.msra.mxu0 %v248
    %275 = vmatprep.subr.mxu0 0.0
    %276 = vmatpush1.xpose.msra.mxu0 %v247
    %277 = vmatprep.subr.mxu0 0.0
    %278 = vmatpush1.xpose.msra.mxu0 %v246
    %279 = vmatprep.subr.mxu0 0.0
    %280 = vmatpush1.xpose.msra.mxu0 %v245
    %281 = vmatprep.subr.mxu0 0.0
    %282 = vmatpush1.xpose.msra.mxu0 %v244
    %283 = vmatprep.subr.mxu0 0.0
    %284 = vmatpush1.xpose.msra.mxu0 %v243
    %285 = vmatprep.subr.mxu0 0.0
    %286 = vmatpush1.xpose.msra.mxu0 %v242
    %287 = vmatprep.subr.mxu0 0.0
    %288 = vmatpush1.xpose.msra.mxu0 %v241
    %289 = vmatprep.subr.mxu0 0.0
    %290 = vmatpush2.xpose.msra.mxu0 0.0
    %291 = vmatprep.subr.mxu0 0.0
    %292 = vmatpush2.xpose.msra.mxu0 0.0
    %293 = vmatprep.subr.mxu0 0.0
    %294 = vmatpush2.xpose.msra.mxu0 0.0
    %295 = vmatprep.subr.mxu0 0.0
    %296 = vmatpush2.xpose.msra.mxu0 0.0
    %297 = vmatprep.subr.mxu0 0.0
    %298 = vmatpush2.xpose.msra.mxu0 0.0
    %299 = vmatprep.subr.mxu0 0.0
    %300 = vmatpush2.xpose.msra.mxu0 0.0
    %301 = vmatprep.subr.mxu0 0.0
    %302 = vmatpush2.xpose.msra.mxu0 0.0
    %303 = vmatprep.subr.mxu0 0.0
    %304 = vmatpush2.xpose.msra.mxu0 0.0
    %305 = vmatprep.subr.mxu0 0.0
    %306 = vmatpush2.xpose.msra.mxu0 0.0
    %307 = vmatprep.subr.mxu0 0.0
    %308 = vmatpush2.xpose.msra.mxu0 0.0
    %309 = vmatprep.subr.mxu0 0.0
    %310 = vmatpush2.xpose.msra.mxu0 0.0
    %311 = vmatprep.subr.mxu0 0.0
    %312 = vmatpush2.xpose.msra.mxu0 0.0
    %313 = vmatprep.subr.mxu0 0.0
    %314 = vmatpush2.xpose.msra.mxu0 0.0
    %315 = vmatprep.subr.mxu0 0.0
    %316 = vmatpush2.xpose.msra.mxu0 0.0
    %317 = vmatprep.subr.mxu0 0.0
    %318 = vmatpush2.xpose.msra.mxu0 0.0
    %319 = vmatprep.subr.mxu0 0.0
    %320 = vmatpush2.xpose.msra.mxu0 0.0
    %321 = vmatprep.mubr.f32.mxu0 0.0
    %322 = vmatmul.mubr.f32.gmra.mxu0 %v239
    %v323 = vpop.f32.mrf.mxu0
    %v324 = vadd.f32 0.0, %v323
    %v325 = vpop.f32.mrf.mxu0
    %326 = vmatprep.mubr.f32.mxu0 0.0
    %327 = vmatmul.mubr.f32.gmra.mxu0 %v240
    %v328 = vpop.f32.mrf.mxu0
    %v329 = vadd.f32 0.0, %v328
    %v330 = vpop.f32.mrf.mxu0
    %331 = vdwg.mxu0
    %s332 = sld [smem:[#allocation4]]
    %v333 = vld [vmem:[#allocation2] sm:$0xff]
    %v334 = vld [vmem:[#allocation2 + $0x8] sm:$0xff]
    %v335 = vld [vmem:[%s2] sm:$0x1]
    %v337 = vlaneseq
    %v338 = vshrl.u32 %v337, 7
    %v339 = vsub.s32 0, %v338
    %v340 = vrot.slane %v335, %v339
    %v342 = vadd.f32 %v333, %v340
    %v343 = vadd.f32 %v334, %v340
    %v344 = vstv %s332
    %v345 = vmul.f32 %v344, %v324
    %v346 = vmul.f32 %v344, %v329
    %v347 = vadd.f32 %v342, %v345
    %v348 = vadd.f32 %v343, %v346
    %349 = vst [vmem:[%s6] sm:$0xff] %v347
    %350 = vst [vmem:[%s6 + $0x8] sm:$0xff] %v348
  $region41: #{monkey_patch_lora_linear.1} parent=0 // pred_fallthru
    _
  // Predicated region
  $region42: #{monkey_patch_lora_linear.1} parent=0 // pred_check
    _
  $region43: #{monkey_patch_lora_linear.1} parent=0 // pred_check_branch
    %352 = sbr.rel (0) target = $region45
  $region44: #{monkey_patch_lora_linear.1} parent=0 // pred_region
    _
  $region45: #{monkey_patch_lora_linear.1} parent=0 // pred_fallthru
    _
  // Predicated region
  $region46: #{monkey_patch_lora_linear.1} parent=0 // pred_check
    _
  $region47: #{monkey_patch_lora_linear.1} parent=0 // pred_check_branch
    %354 = sbr.rel (0) target = $region49
  $region48: #{monkey_patch_lora_linear.1} parent=0 // pred_region
    _
  $region49: #{monkey_patch_lora_linear.1} parent=0 // pred_fallthru
    _

</llo_original>
